<compile_context>
chip_gen: v6e
topology: v6e:2x2x1
jax: 0.10.0
libtpu: 0.0.40
codegen_flags: <defaults>
</compile_context>

<pallas_src>
import jax
import jax.numpy as jnp
from jax import lax
from jax.experimental import pallas as pl
from jax.experimental.pallas import tpu as pltpu

HIDDEN = 128
_MAX_TILE_B = 2048          # multiple of 128; safe on v7x (64 MiB phys / 32 MiB scoped VMEM)
_VPU_HIDDEN_MAX_K = 8       # below this, compute the hidden layer on the VPU, not the MXU


def _softplus(x):
    # Numerically stable softplus == torch.nn.functional.softplus (beta=1)
    return jnp.maximum(x, 0.0) + jnp.log1p(jnp.exp(-jnp.abs(x)))


def actor_kernel(bound_ref, x_ref, w1_ref, b1_ref, w23t_ref, b23_ref, out_ref):
    x = x_ref[...]                                   # (TB, n_states) f32
    n_states = w1_ref.shape[0]

    # ---- hidden layer: Linear(n_states, 128) + ReLU -------------------------
    if n_states <= _VPU_HIDDEN_MAX_K:
        # K is tiny: unrolled VPU FMA chain; a K=4 matmul leaves the MXU ~idle.
        h = b1_ref[...] + x[:, 0:1] * w1_ref[0:1, :]
        for k in range(1, n_states):
            h = h + x[:, k:k + 1] * w1_ref[k:k + 1, :]
    else:
        h = jnp.dot(x, w1_ref[...], preferred_element_type=jnp.float32) + b1_ref[...]
    h = jnp.maximum(h, 0.0)                          # single ReLU (second one was redundant)

    # ---- fused mu/sigma heads, emitted lane-dense as (2, TB) ----------------
    # w23t is (2, HIDDEN); contract both operands on the HIDDEN axis -> (2, TB)
    # so the output's last dim is the (large, 128-multiple) batch tile.
    head = lax.dot_general(
        w23t_ref[...], h,
        dimension_numbers=(((1,), (1,)), ((), ())),
        preferred_element_type=jnp.float32,
    ) + b23_ref[...]                                 # (2, TB); row 0 = mu, row 1 = sigma

    bound = bound_ref[0, 0]
    row = lax.broadcasted_iota(jnp.int32, head.shape, 0)
    mu_rows = bound * jnp.tanh(head)                 # EUP work is tiny (2*TB elems)
    sigma_rows = _softplus(head)
    out_ref[...] = jnp.where(row == 0, mu_rows, sigma_rows).astype(out_ref.dtype)


def actor_net_forward(x, params, bound, *, max_tile_b=_MAX_TILE_B):
    """x: (B, n_states) float32. Returns (mu, sigma), each (B, 1) float32."""
    B, n_states = x.shape
    assert max_tile_b % 128 == 0
    tb = B if B <= max_tile_b else max_tile_b        # full batch, or a 128-multiple tile
    num_blocks = pl.cdiv(B, tb)

    bound_arr = jnp.full((1, 1), bound, dtype=jnp.float32)

    out = pl.pallas_call(
        actor_kernel,
        out_shape=jax.ShapeDtypeStruct((2, B), jnp.float32),
        grid=(num_blocks,),
        in_specs=[
            pl.BlockSpec(memory_space=pltpu.MemorySpace.SMEM),      # bound (1,1) scalar
            pl.BlockSpec((tb, n_states), lambda i: (i, 0)),         # x batch tile
            pl.BlockSpec((n_states, HIDDEN), lambda i: (0, 0)),     # w1 (VMEM-resident)
            pl.BlockSpec((1, HIDDEN), lambda i: (0, 0)),            # b1
            pl.BlockSpec((2, HIDDEN), lambda i: (0, 0)),            # fused head weights (transposed)
            pl.BlockSpec((2, 1), lambda i: (0, 0)),                 # fused head bias
        ],
        out_specs=pl.BlockSpec((2, tb), lambda i: (0, i)),          # lane-dense (2, B) slab
        compiler_params=pltpu.CompilerParams(
            dimension_semantics=("parallel",),                      # v7x: shard batch across TCs
            vmem_limit_bytes=32 * 1024 * 1024,                      # explicit, v7x-safe
        ),
    )(bound_arr, x, params["w1"], params["b1"], params["w23_t"], params["b23"])

    mu = out[0].reshape(B, 1)
    sigma = out[1].reshape(B, 1)
    return mu, sigma


def init_params(key, n_states):
    """Deterministic init mimicking torch.nn.Linear default (U(-1/sqrt(fan_in), +))."""
    k1, k2, k3, k4 = jax.random.split(key, 4)

    def uni(k, shape, fan_in):
        lim = 1.0 / jnp.sqrt(float(fan_in))
        return jax.random.uniform(k, shape, jnp.float32, -lim, lim)

    return {
        "w1": uni(k1, (n_states, HIDDEN), n_states),   # (in, out): kernel does x @ W
        "b1": uni(k2, (1, HIDDEN), n_states),
        # fused mu|sigma head, stored transposed: row 0 = mu weights, row 1 = sigma weights
        "w23_t": uni(k3, (2, HIDDEN), HIDDEN),
        "b23": uni(k4, (2, 1), HIDDEN),
    }


def actor_net_reference(x, params, bound):
    h = jnp.maximum(x @ params["w1"] + params["b1"], 0.0)
    head = h @ params["w23_t"].T + params["b23"].T          # (B, 2)
    mu = bound * jnp.tanh(head[:, 0:1])
    sigma = jax.nn.softplus(head[:, 1:2])
    return mu, sigma


if __name__ == "__main__":
    key = jax.random.PRNGKey(0)
    kx, kp, kx2, kp2 = jax.random.split(key, 4)
    bound = 2.0

    # Case 1: RL-sized shapes (single block, VPU hidden path, n_states=4).
    batch, n_states = 8, 4
    x = jax.random.normal(kx, (batch, n_states), jnp.float32)
    params = init_params(kp, n_states)
    mu, sigma = actor_net_forward(x, params, bound)
    jax.block_until_ready((mu, sigma))
    mu_r, sigma_r = actor_net_reference(x, params, bound)
    assert mu.shape == (batch, 1) and sigma.shape == (batch, 1)
    assert jnp.allclose(mu, mu_r, atol=1e-5, rtol=1e-4)
    assert jnp.allclose(sigma, sigma_r, atol=1e-5, rtol=1e-4)
    assert bool(jnp.all(sigma > 0.0))

    # Case 2: gridded path with a partial last tile + MXU hidden path (n_states=32).
    batch2, n_states2 = 200, 32
    x2 = jax.random.normal(kx2, (batch2, n_states2), jnp.float32)
    params2 = init_params(kp2, n_states2)
    mu2, sigma2 = actor_net_forward(x2, params2, bound, max_tile_b=128)
    jax.block_until_ready((mu2, sigma2))
    mu2_r, sigma2_r = actor_net_reference(x2, params2, bound)
    assert mu2.shape == (batch2, 1) and sigma2.shape == (batch2, 1)
    assert jnp.allclose(mu2, mu2_r, atol=1e-5, rtol=1e-4)
    assert jnp.allclose(sigma2, sigma2_r, atol=1e-5, rtol=1e-4)
    assert bool(jnp.all(sigma2 > 0.0))

    print("KERNEL_OK")
</pallas_src>

<mosaic_0001>
module attributes {stable_mosaic.version = 11 : i64} {
  func.func @actor_kernel(%arg0: i32, %arg1: memref<1x1xf32, #tpu.memory_space<smem>>, %arg2: memref<8x4xf32, #tpu.memory_space<vmem>>, %arg3: memref<4x128xf32, #tpu.memory_space<vmem>>, %arg4: memref<1x128xf32, #tpu.memory_space<vmem>>, %arg5: memref<2x128xf32, #tpu.memory_space<vmem>>, %arg6: memref<2x1xf32, #tpu.memory_space<vmem>>, %arg7: memref<2x8xf32, #tpu.memory_space<vmem>>) attributes {dimension_semantics = [#tpu.dimension_semantics<parallel>], iteration_bounds = array<i64: 1>, scalar_prefetch = 0 : i64, scratch_operands = 0 : i64, tpu.core_type = #tpu.core_type<tc>, window_params = [{transform_indices = @transform_0, window_bounds = array<i64: 1, 1>}, {transform_indices = @transform_1, window_bounds = array<i64: 8, 4>}, {pipeline_mode = #tpu.pipeline_mode<synchronous>, transform_indices = @transform_2, window_bounds = array<i64: 4, 128>}, {pipeline_mode = #tpu.pipeline_mode<synchronous>, transform_indices = @transform_3, window_bounds = array<i64: 1, 128>}, {pipeline_mode = #tpu.pipeline_mode<synchronous>, transform_indices = @transform_4, window_bounds = array<i64: 2, 128>}, {pipeline_mode = #tpu.pipeline_mode<synchronous>, transform_indices = @transform_5, window_bounds = array<i64: 2, 1>}, {transform_indices = @transform_6, window_bounds = array<i64: 2, 8>}]} {
    %c0 = arith.constant 0 : index
    %c0_0 = arith.constant 0 : index
    %0 = vector.load %arg2[%c0, %c0_0] : memref<8x4xf32, #tpu.memory_space<vmem>>, vector<8x4xf32>
    %c0_1 = arith.constant 0 : index
    %c0_2 = arith.constant 0 : index
    %1 = vector.load %arg4[%c0_1, %c0_2] : memref<1x128xf32, #tpu.memory_space<vmem>>, vector<1x128xf32>
    %2 = vector.extract_strided_slice %0 {offsets = [0, 0], sizes = [8, 1], strides = [1, 1]} : vector<8x4xf32> to vector<8x1xf32>
    %c0_3 = arith.constant 0 : index
    %c0_4 = arith.constant 0 : index
    %3 = vector.load %arg3[%c0_3, %c0_4] : memref<4x128xf32, #tpu.memory_space<vmem>>, vector<1x128xf32>
    %4 = vector.broadcast %2 : vector<8x1xf32> to vector<8x128xf32>
    %5 = vector.broadcast %3 : vector<1x128xf32> to vector<8x128xf32>
    %6 = arith.mulf %4, %5 : vector<8x128xf32>
    %7 = vector.broadcast %1 : vector<1x128xf32> to vector<8x128xf32>
    %8 = arith.addf %7, %6 : vector<8x128xf32>
    %9 = vector.extract_strided_slice %0 {offsets = [0, 1], sizes = [8, 1], strides = [1, 1]} : vector<8x4xf32> to vector<8x1xf32>
    %c1 = arith.constant 1 : index
    %c0_5 = arith.constant 0 : index
    %10 = vector.load %arg3[%c1, %c0_5] : memref<4x128xf32, #tpu.memory_space<vmem>>, vector<1x128xf32>
    %11 = vector.broadcast %9 : vector<8x1xf32> to vector<8x128xf32>
    %12 = vector.broadcast %10 : vector<1x128xf32> to vector<8x128xf32>
    %13 = arith.mulf %11, %12 : vector<8x128xf32>
    %14 = arith.addf %8, %13 : vector<8x128xf32>
    %15 = vector.extract_strided_slice %0 {offsets = [0, 2], sizes = [8, 1], strides = [1, 1]} : vector<8x4xf32> to vector<8x1xf32>
    %c2 = arith.constant 2 : index
    %c0_6 = arith.constant 0 : index
    %16 = vector.load %arg3[%c2, %c0_6] : memref<4x128xf32, #tpu.memory_space<vmem>>, vector<1x128xf32>
    %17 = vector.broadcast %15 : vector<8x1xf32> to vector<8x128xf32>
    %18 = vector.broadcast %16 : vector<1x128xf32> to vector<8x128xf32>
    %19 = arith.mulf %17, %18 : vector<8x128xf32>
    %20 = arith.addf %14, %19 : vector<8x128xf32>
    %21 = vector.extract_strided_slice %0 {offsets = [0, 3], sizes = [8, 1], strides = [1, 1]} : vector<8x4xf32> to vector<8x1xf32>
    %c3 = arith.constant 3 : index
    %c0_7 = arith.constant 0 : index
    %22 = vector.load %arg3[%c3, %c0_7] : memref<4x128xf32, #tpu.memory_space<vmem>>, vector<1x128xf32>
    %23 = vector.broadcast %21 : vector<8x1xf32> to vector<8x128xf32>
    %24 = vector.broadcast %22 : vector<1x128xf32> to vector<8x128xf32>
    %25 = arith.mulf %23, %24 : vector<8x128xf32>
    %26 = arith.addf %20, %25 : vector<8x128xf32>
    %cst = arith.constant 0.000000e+00 : f32
    %27 = vector.broadcast %cst : f32 to vector<8x128xf32>
    %28 = arith.maximumf %26, %27 : vector<8x128xf32>
    %c0_8 = arith.constant 0 : index
    %c0_9 = arith.constant 0 : index
    %29 = vector.load %arg5[%c0_8, %c0_9] : memref<2x128xf32, #tpu.memory_space<vmem>>, vector<2x128xf32>
    %cst_10 = arith.constant dense<0.000000e+00> : vector<2x8xf32>
    %30 = tpu.matmul %29, %28, %cst_10 {dimension_numbers = #tpu.dot_dimension_numbers<[1], [1], [0], [0], [0, 0, 1, 0], [], []>} : vector<2x128xf32>, vector<8x128xf32>, vector<2x8xf32> -> vector<2x8xf32>
    %c0_11 = arith.constant 0 : index
    %c0_12 = arith.constant 0 : index
    %31 = vector.load %arg6[%c0_11, %c0_12] : memref<2x1xf32, #tpu.memory_space<vmem>>, vector<2x1xf32>
    %32 = vector.broadcast %31 : vector<2x1xf32> to vector<2x8xf32>
    %33 = arith.addf %30, %32 : vector<2x8xf32>
    %c0_13 = arith.constant 0 : index
    %c0_14 = arith.constant 0 : index
    %34 = memref.load %arg1[%c0_13, %c0_14] : memref<1x1xf32, #tpu.memory_space<smem>>
    %35 = tpu.iota {dimensions = array<i32: 0>} : vector<2x8xi32>
    %36 = math.tanh %33 : vector<2x8xf32>
    %37 = vector.broadcast %34 : f32 to vector<2x8xf32>
    %38 = arith.mulf %37, %36 : vector<2x8xf32>
    %cst_15 = arith.constant 0.000000e+00 : f32
    %39 = vector.broadcast %cst_15 : f32 to vector<2x8xf32>
    %40 = arith.maximumf %33, %39 : vector<2x8xf32>
    %41 = math.absf %33 : vector<2x8xf32>
    %cst_16 = arith.constant 0.000000e+00 : f32
    %42 = vector.broadcast %cst_16 : f32 to vector<2x8xf32>
    %43 = arith.subf %42, %41 : vector<2x8xf32>
    %44 = math.exp %43 : vector<2x8xf32>
    %45 = math.log1p %44 : vector<2x8xf32>
    %46 = arith.addf %40, %45 : vector<2x8xf32>
    %c0_i32 = arith.constant 0 : i32
    %47 = vector.broadcast %c0_i32 : i32 to vector<2x8xi32>
    %48 = arith.cmpi eq, %35, %47 : vector<2x8xi32>
    %49 = arith.select %48, %38, %46 : vector<2x8xi1>, vector<2x8xf32>
    %c0_17 = arith.constant 0 : index
    %c0_18 = arith.constant 0 : index
    %50 = vector.load %arg7[%c0_17, %c0_18] : memref<2x8xf32, #tpu.memory_space<vmem>>, vector<2x8xf32>
    tpu.vector_store %arg7[%c0_17, %c0_18], %49 {strides = array<i32>} : memref<2x8xf32, #tpu.memory_space<vmem>>, vector<2x8xf32>,
    return
  }
  func.func @transform_0(%arg0: i32) -> (i32, i32) {
    %c0_i32 = arith.constant 0 : i32
    %c0_i32_0 = arith.constant 0 : i32
    %c0_i32_1 = arith.constant 0 : i32
    return %c0_i32, %c0_i32_0 : i32, i32
  }
  func.func @transform_1(%arg0: i32) -> (i32, i32) {
    %c0_i32 = arith.constant 0 : i32
    %c0_i32_0 = arith.constant 0 : i32
    return %arg0, %c0_i32 : i32, i32
  }
  func.func @transform_2(%arg0: i32) -> (i32, i32) {
    %c0_i32 = arith.constant 0 : i32
    %c0_i32_0 = arith.constant 0 : i32
    %c0_i32_1 = arith.constant 0 : i32
    return %c0_i32, %c0_i32_0 : i32, i32
  }
  func.func @transform_3(%arg0: i32) -> (i32, i32) {
    %c0_i32 = arith.constant 0 : i32
    %c0_i32_0 = arith.constant 0 : i32
    %c0_i32_1 = arith.constant 0 : i32
    return %c0_i32, %c0_i32_0 : i32, i32
  }
  func.func @transform_4(%arg0: i32) -> (i32, i32) {
    %c0_i32 = arith.constant 0 : i32
    %c0_i32_0 = arith.constant 0 : i32
    %c0_i32_1 = arith.constant 0 : i32
    return %c0_i32, %c0_i32_0 : i32, i32
  }
  func.func @transform_5(%arg0: i32) -> (i32, i32) {
    %c0_i32 = arith.constant 0 : i32
    %c0_i32_0 = arith.constant 0 : i32
    %c0_i32_1 = arith.constant 0 : i32
    return %c0_i32, %c0_i32_0 : i32, i32
  }
  func.func @transform_6(%arg0: i32) -> (i32, i32) {
    %c0_i32 = arith.constant 0 : i32
    %c0_i32_0 = arith.constant 0 : i32
    return %c0_i32, %arg0 : i32, i32
  }
}

</mosaic_0001>

<llo_original>
// kernel: tpu_custom_call.1
$region0: #{tpu_custom_call.1}
  #allocation0 [shape = 'u32[]', space=smem, size = 0x4, offset = 0x4, fixed_abs, tag = 'smem constant byte address 0x4 - core index']
  #allocation1 [shape = 'u32[144,128]{1,0:T(1,128)}', space=vmem, size = 0x12000, scoped, tag = 'internal scratch']
  #allocation2 [shape = 'f32[1,1]{1,0:T(1,128)S(6)}', space=smem, size = 0x200, scoped, tag = 'scoped memory for tpu_custom_call.1']
  %s0 = inlined_call_operand.<no memory space> [shape: f32[1,1], index: 0, kind: input, shape index: {}]
  %s1 = inlined_call_operand.vmem [shape: f32[8,4], index: 1, kind: input, shape index: {}]
  %s2 = inlined_call_operand.vmem [shape: f32[4,128], index: 2, kind: input, shape index: {}]
  %s3 = inlined_call_operand.vmem [shape: f32[1,128], index: 3, kind: input, shape index: {}]
  %s4 = inlined_call_operand.vmem [shape: f32[2,128], index: 4, kind: input, shape index: {}]
  %s5 = inlined_call_operand.vmem [shape: f32[2,1], index: 5, kind: input, shape index: {}]
  %s6 = inlined_call_operand.hbm [shape: f32[2,8], index: 6, kind: output, shape index: {}]
  %s7 = sld [smem:[#allocation0]]
  $region34: #{tpu_custom_call.1} parent=0
    _
  %s9 = ssub.s32 1, %s7
  %s10 = scalar_select 0, %s9, %s7
  %11 = sst [smem:[#allocation2]] %s0
  $region1: #{tpu_custom_call.1} parent=0
    #allocation3 [shape = 'u8[1024]{0}', space=vmem, size = 0x400, scoped, tag = 'output window, operand 0, single buffered']
    #allocation4 [shape = 's32[1]{0}', space=sflag, size = 0x4, scoped, tag = 'scoped memory for tpu_custom_call.1']
    %12 = vsyncpa [#allocation4], 0
    // Predicated region
    $region2: #{tpu_custom_call.1} parent=1 // pred_check
      _
    $region3: #{tpu_custom_call.1} parent=1 // pred_check_branch
      %14 = sbr.rel (0) target = $region5
    $region4: #{tpu_custom_call.1} parent=1 // pred_region
      _
    $region5: #{tpu_custom_call.1} parent=1 // pred_fallthru
      _
    // Predicated region
    $region6: #{tpu_custom_call.1} parent=1 // pred_check
      _
    $region7: #{tpu_custom_call.1} parent=1 // pred_check_branch
      %16 = sbr.rel (0) target = $region9
    $region8: #{tpu_custom_call.1} parent=1 // pred_region
      _
    $region9: #{tpu_custom_call.1} parent=1 // pred_fallthru
      _
    // Predicated region
    $region10: #{tpu_custom_call.1} parent=1 // pred_check
      _
    $region11: #{tpu_custom_call.1} parent=1 // pred_check_branch
      %18 = sbr.rel (0) target = $region13
    $region12: #{tpu_custom_call.1} parent=1 // pred_region
      _
    $region13: #{tpu_custom_call.1} parent=1 // pred_fallthru
      _
    // Predicated region
    $region14: #{tpu_custom_call.1} parent=1 // pred_check
      _
    $region15: #{tpu_custom_call.1} parent=1 // pred_check_branch
      %20 = sbr.rel (0) target = $region17
    $region16: #{tpu_custom_call.1} parent=1 // pred_region
      _
    $region17: #{tpu_custom_call.1} parent=1 // pred_fallthru
      _
    // Predicated region
    $region18: #{tpu_custom_call.1} parent=1 // pred_check
      _
    $region19: #{tpu_custom_call.1} parent=1 // pred_check_branch
      %22 = sbr.rel (0) target = $region21
    $region20: #{tpu_custom_call.1} parent=1 // pred_region
      _
    $region21: #{tpu_custom_call.1} parent=1 // pred_fallthru
      _
    // Predicated region
    $region22: #{tpu_custom_call.1} parent=1 // pred_check
      _
    $region23: #{tpu_custom_call.1} parent=1 // pred_check_branch
      %24 = sbr.rel (0) target = $region25
    $region24: #{tpu_custom_call.1} parent=1 // pred_region
      _
    $region25: #{tpu_custom_call.1} parent=1 // pred_fallthru
      _
    %v25 = vld [vmem:[%s1] sm:$0xff]
    %v26 = vld [vmem:[%s3] sm:$0x1]
    %v27 = vld [vmem:[%s2] sm:$0x1]
    %29 = vset.pattern.permute.xlu0 0
    %30 = vperm.xlu0 %29, %v25
    %v31 = vpop.permute.xlu0 %30
    %v33 = vlaneseq
    %v34 = vshrl.u32 %v33, 7
    %v35 = vsub.s32 0, %v34
    %v36 = vrot.slane %v27, %v35
    %v37 = vmul.f32 %v31, %v36
    %v39 = vlaneseq
    %v40 = vshrl.u32 %v39, 7
    %v41 = vsub.s32 0, %v40
    %v42 = vrot.slane %v26, %v41
    %v44 = vadd.f32 %v42, %v37
    %v45 = vld [vmem:[%s2 + $0x1] sm:$0x1]
    %46 = vset.pattern.permute.xlu0 1
    %47 = vperm.xlu0 %46, %v25
    %v48 = vpop.permute.xlu0 %47
    %v50 = vlaneseq
    %v51 = vshrl.u32 %v50, 7
    %v52 = vsub.s32 0, %v51
    %v53 = vrot.slane %v45, %v52
    %v54 = vmul.f32 %v48, %v53
    %v55 = vadd.f32 %v44, %v54
    %v56 = vld [vmem:[%s2 + $0x2] sm:$0x1]
    %57 = vset.pattern.permute.xlu0 2
    %58 = vperm.xlu0 %57, %v25
    %v59 = vpop.permute.xlu0 %58
    %v61 = vlaneseq
    %v62 = vshrl.u32 %v61, 7
    %v63 = vsub.s32 0, %v62
    %v64 = vrot.slane %v56, %v63
    %v65 = vmul.f32 %v59, %v64
    %v66 = vadd.f32 %v55, %v65
    %v67 = vld [vmem:[%s2 + $0x3] sm:$0x1]
    %68 = vset.pattern.permute.xlu0 3
    %69 = vperm.xlu0 %68, %v25
    %v70 = vpop.permute.xlu0 %69
    %v72 = vlaneseq
    %v73 = vshrl.u32 %v72, 7
    %v74 = vsub.s32 0, %v73
    %v75 = vrot.slane %v67, %v74
    %v76 = vmul.f32 %v70, %v75
    %v77 = vadd.f32 %v66, %v76
    %v78 = vmax.f32 %v77, 0.0
    %v79 = vld [vmem:[%s4] sm:$0x3]
    %v80 = vld [vmem:[%s5] sm:$0x3]
    %82 = vset.pattern.permute.xlu0 0
    %83 = vperm.xlu0 %82, %v80
    %v84 = vpop.permute.xlu0 %83
    %86 = vmatprep.subr.mxu0 0.0
    %87 = vmatpush1.xpose.msra.mxu0 0.0
    %88 = vmatprep.subr.mxu0 0.0
    %89 = vmatpush1.xpose.msra.mxu0 0.0
    %90 = vmatprep.subr.mxu0 0.0
    %91 = vmatpush1.xpose.msra.mxu0 0.0
    %92 = vmatprep.subr.mxu0 0.0
    %93 = vmatpush1.xpose.msra.mxu0 0.0
    %94 = vmatprep.subr.mxu0 0.0
    %95 = vmatpush1.xpose.msra.mxu0 0.0
    %96 = vmatprep.subr.mxu0 0.0
    %97 = vmatpush1.xpose.msra.mxu0 0.0
    %98 = vmatprep.subr.mxu0 0.0
    %99 = vmatpush1.xpose.msra.mxu0 0.0
    %100 = vmatprep.subr.mxu0 0.0
    %101 = vmatpush1.xpose.msra.mxu0 0.0
    %102 = vmatprep.subr.mxu0 0.0
    %103 = vmatpush1.xpose.msra.mxu0 0.0
    %104 = vmatprep.subr.mxu0 0.0
    %105 = vmatpush1.xpose.msra.mxu0 0.0
    %106 = vmatprep.subr.mxu0 0.0
    %107 = vmatpush1.xpose.msra.mxu0 0.0
    %108 = vmatprep.subr.mxu0 0.0
    %109 = vmatpush1.xpose.msra.mxu0 0.0
    %110 = vmatprep.subr.mxu0 0.0
    %111 = vmatpush1.xpose.msra.mxu0 0.0
    %112 = vmatprep.subr.mxu0 0.0
    %113 = vmatpush1.xpose.msra.mxu0 0.0
    %114 = vmatprep.subr.mxu0 0.0
    %115 = vmatpush1.xpose.msra.mxu0 0.0
    %116 = vmatprep.subr.mxu0 0.0
    %117 = vmatpush1.xpose.msra.mxu0 %v78
    %118 = vmatprep.subr.mxu0 0.0
    %119 = vmatpush2.xpose.msra.mxu0 0.0
    %120 = vmatprep.subr.mxu0 0.0
    %121 = vmatpush2.xpose.msra.mxu0 0.0
    %122 = vmatprep.subr.mxu0 0.0
    %123 = vmatpush2.xpose.msra.mxu0 0.0
    %124 = vmatprep.subr.mxu0 0.0
    %125 = vmatpush2.xpose.msra.mxu0 0.0
    %126 = vmatprep.subr.mxu0 0.0
    %127 = vmatpush2.xpose.msra.mxu0 0.0
    %128 = vmatprep.subr.mxu0 0.0
    %129 = vmatpush2.xpose.msra.mxu0 0.0
    %130 = vmatprep.subr.mxu0 0.0
    %131 = vmatpush2.xpose.msra.mxu0 0.0
    %132 = vmatprep.subr.mxu0 0.0
    %133 = vmatpush2.xpose.msra.mxu0 0.0
    %134 = vmatprep.subr.mxu0 0.0
    %135 = vmatpush2.xpose.msra.mxu0 0.0
    %136 = vmatprep.subr.mxu0 0.0
    %137 = vmatpush2.xpose.msra.mxu0 0.0
    %138 = vmatprep.subr.mxu0 0.0
    %139 = vmatpush2.xpose.msra.mxu0 0.0
    %140 = vmatprep.subr.mxu0 0.0
    %141 = vmatpush2.xpose.msra.mxu0 0.0
    %142 = vmatprep.subr.mxu0 0.0
    %143 = vmatpush2.xpose.msra.mxu0 0.0
    %144 = vmatprep.subr.mxu0 0.0
    %145 = vmatpush2.xpose.msra.mxu0 0.0
    %146 = vmatprep.subr.mxu0 0.0
    %147 = vmatpush2.xpose.msra.mxu0 0.0
    %148 = vmatprep.subr.mxu0 0.0
    %149 = vmatpush2.xpose.msra.mxu0 0.0
    %150 = vmatprep.mubr.f32.mxu0 0.0
    %151 = vmatmul.mubr.f32.gmra.mxu0 %v79
    %v152 = vpop.f32.mrf.mxu0
    %v153 = vadd.f32 %v84, %v152
    %v154 = vpop.f32.mrf.mxu0
    %155 = vdwg.mxu0
    %s156 = sld [smem:[#allocation2]]
    %v157 = vlaneseq
    %v158 = vshrl.u32 %v157, 7
    %v159 = vtanh.pop %v153
    %v160 = vstv %s156
    %v161 = vmul.f32 %v160, %v159
    %v162 = vmax.f32 %v153, 0.0
    %v163 = vand.u32 2147483647, %v153
    %v164 = vsub.f32 0.0, %v163
    %v165 = vmul.f32 %v164, 1.442695
    %v166 = vpow.pop %v165
    %v167 = vadd.f32 %v166, 1.0
    %v168 = vlog2.pop %v167
    %v169 = vmul.f32 %v168, 0.6931472
    %v170 = vmul.f32 -0.5, %v166
    %v171 = vadd.f32 %v170, 1.0
    %v172 = vmul.f32 %v171, %v166
    %v173 = vand.u32 2147483647, %v166
    %vm174 = vcmp.lt.f32.partialorder %v173, 0.0004427343
    %v175 = vsel %vm174, %v172, %v169
    %v176 = vadd.f32 %v162, %v175
    %vm177 = vcmp.eq.s32.totalorder %v158, 0
    %v178 = vsel %vm177, %v161, %v176
    %vm179 = vcmask 58368
    %180 = vst.msk [vmem:[#allocation3] sm:$0x3] %vm179, %v178
    // Predicated region
    $region26: #{tpu_custom_call.1} parent=1 // pred_check
      _
    $region27: #{tpu_custom_call.1} parent=1 // pred_check_branch
      %182 = sbr.rel (0) target = $region29
    $region28: #{tpu_custom_call.1} parent=1 // pred_region
      %s184 = ssub.s32 32, 32
      %185 = vsyncadd [#allocation4], %s184
      %s187 = sshll.u32 [#allocation3], 4
      %s188 = int_to_ptr.vmem [resolvable:$true] %s187
      %190 = dma.vmem_to_hbm [thread:$0]  %s188, 32, %s6, [#allocation4]
    $region29: #{tpu_custom_call.1} parent=1 // pred_fallthru
      _
    // Predicated region
    $region30: #{tpu_custom_call.1} parent=1 // pred_check
      _
    $region31: #{tpu_custom_call.1} parent=1 // pred_check_branch
      %192 = sbr.rel (0) target = $region33
    $region32: #{tpu_custom_call.1} parent=1 // pred_region
      %193 = dma.done [#allocation4], 32
    $region33: #{tpu_custom_call.1} parent=1 // pred_fallthru
      _
    %194 = vsyncpa [#allocation4], 1

</llo_original>
